<compile_context>
chip_gen: v7x
topology: tpu7x:2x2x1
jax: 0.10.0
libtpu: 0.0.40
codegen_flags: <defaults>
</compile_context>

<pallas_src>
import functools

import jax
import jax.numpy as jnp
from jax.experimental import pallas as pl
from jax.experimental.pallas import tpu as pltpu

LANE = 128
SUBLANE = 8


def _round_up(n, m):
    return ((n + m - 1) // m) * m


def _cdiv(a, b):
    return (a + b - 1) // b


def _vmem_capacity_bytes():
    try:
        return int(pltpu.get_tpu_info().vmem_capacity_bytes)
    except Exception:
        return 64 << 20        # conservative fallback = v7x physical VMEM


def _write_stats(o_ref, mean, var, stats_type, second_only):
    var = jnp.maximum(var, 0.0)                # guard fp cancellation before sqrt
    if stats_type == 'standard':
        second = jnp.sqrt(var)
    elif stats_type == 'rms':
        second = jnp.sqrt(mean * mean + var)
    else:
        raise NotImplementedError(stats_type)
    if second_only:
        o_ref[:, 0, :] = second.astype(o_ref.dtype)
    else:
        o_ref[:, 0, :] = mean.astype(o_ref.dtype)
        o_ref[:, 1, :] = second.astype(o_ref.dtype)


def _stats_pool_kernel(x_ref, o_ref, *scratch, stats_type, second_only,
                       inv_t, n_t, t_rem):
    x = x_ref[...].astype(jnp.float32)                     # (TB, C, TT)

    if n_t == 1:
        # Whole time axis in a single tile (TT == T, no out-of-bounds columns):
        # exact two-pass mean/variance, numerically robust for large DC offsets.
        mean = jnp.sum(x, axis=-1) * inv_t                 # (TB, C)
        d = x - mean[:, :, None]
        var = jnp.sum(d * d, axis=-1) * inv_t              # biased (unbiased=False)
        _write_stats(o_ref, mean, var, stats_type, second_only)
        return

    s1_ref, s2_ref = scratch
    t = pl.program_id(1)

    if t_rem:
        # Trailing time tile extends past T: zero the out-of-range columns so
        # they contribute nothing to the running sums (we divide by the true T).
        lane = jax.lax.broadcasted_iota(jnp.int32, x.shape, 2)
        keep = jnp.logical_or(t < pl.num_programs(1) - 1, lane < t_rem)
        x = jnp.where(keep, x, 0.0)

    @pl.when(t == 0)
    def _init():
        s1_ref[...] = jnp.zeros_like(s1_ref)
        s2_ref[...] = jnp.zeros_like(s2_ref)

    s1_ref[...] += jnp.sum(x, axis=-1)                     # running sum
    s2_ref[...] += jnp.sum(x * x, axis=-1)                 # running sum of squares

    @pl.when(t == pl.num_programs(1) - 1)
    def _finalize():
        mean = s1_ref[...] * inv_t
        var = s2_ref[...] * inv_t - mean * mean            # clamped in _write_stats
        _write_stats(o_ref, mean, var, stats_type, second_only)


def _choose_tiles(B, C, T, itemsize, vmem_cap, max_batch_tile, max_time_tile):
    """Pick (TB, TT, n_t) from the actual chip VMEM capacity."""
    # VMEM footprint of a (., C, TT) slab: C padded to the dtype's sublane
    # packing, TT padded to the 128-lane tile.
    sub_pack = max(1, 32 // itemsize)          # 8 (f32) / 16 (bf16) / 32 (i8)
    c_eff = _round_up(C, sub_pack)

    # Headroom for output blocks, scratch and Mosaic-internal scratch; the
    # input block is double-buffered.
    per_buf = max((vmem_cap - (12 << 20)) // 2, 4 << 20)

    t_pad = _round_up(T, LANE)
    tt_cap = t_pad if max_time_tile is None else min(
        t_pad, max(LANE, (max_time_tile // LANE) * LANE))

    tb_min = min(B, SUBLANE)
    if tt_cap >= t_pad and tb_min * c_eff * t_pad * itemsize <= per_buf:
        TT = T                                  # single time tile (block dim == array dim)
    else:
        TT = (per_buf // (tb_min * c_eff * itemsize)) // LANE * LANE
        if TT < LANE:
            TT, tb_min = LANE, 1
        TT = min(TT, tt_cap)
        if TT >= t_pad:
            TT = T                              # still covers all of T after the cap
    n_t = _cdiv(T, TT)

    # Batch tile: as many rows as fit the per-buffer budget; when the batch is
    # split, keep TB a multiple of 8 for sublane-dense stores.
    row_bytes = c_eff * _round_up(TT, LANE) * itemsize
    tb_cap = max(1, per_buf // row_bytes)
    if max_batch_tile is not None:
        tb_cap = max(1, min(tb_cap, max_batch_tile))
    if tb_cap >= B:
        TB = B
    elif tb_cap >= SUBLANE:
        TB = (tb_cap // SUBLANE) * SUBLANE
    else:
        TB = tb_cap
    # v7x has 2 TensorCores: guarantee >= 2 steps on the "parallel" batch axis.
    if B > SUBLANE:
        TB = min(TB, _round_up(_cdiv(B, 2), SUBLANE))
    return TB, TT, n_t


def stats_pooling(x, stats_type='standard', is_second_order_stat_only=False,
                  *, max_batch_tile=None, max_time_tile=None):
    """Pallas implementation of StatsPoolingLayer.forward. x: (B, C, T)."""
    if stats_type not in ('standard', 'rms'):
        raise NotImplementedError(stats_type)

    B, C, T = x.shape
    n_stats = 1 if is_second_order_stat_only else 2
    itemsize = jnp.dtype(x.dtype).itemsize
    vmem_cap = _vmem_capacity_bytes()

    TB, TT, n_t = _choose_tiles(B, C, T, itemsize, vmem_cap,
                                max_batch_tile, max_time_tile)
    t_rem = (T % TT) if n_t > 1 else 0
    n_b = _cdiv(B, TB)

    kernel = functools.partial(
        _stats_pool_kernel,
        stats_type=stats_type,
        second_only=is_second_order_stat_only,
        inv_t=1.0 / float(T),
        n_t=n_t,
        t_rem=t_rem,
    )

    # Honest VMEM accounting (sublane/lane padded), never above the physical cap.
    sub_pack = max(1, 32 // itemsize)
    c_lane = _round_up(C, LANE)
    in_block = TB * _round_up(C, sub_pack) * _round_up(TT, LANE) * itemsize
    out_block = TB * _round_up(n_stats, sub_pack) * c_lane * itemsize
    scratch_bytes = (2 * _round_up(TB, SUBLANE) * c_lane * 4) if n_t > 1 else 0
    need = 2 * in_block + 2 * out_block + scratch_bytes
    vmem_limit = int(min(vmem_cap, max(need + (4 << 20), 16 << 20)))

    scratch_shapes = []
    if n_t > 1:
        scratch_shapes = [pltpu.VMEM((TB, C), jnp.float32),   # running sum
                          pltpu.VMEM((TB, C), jnp.float32)]   # running sum of squares

    out3 = pl.pallas_call(
        kernel,
        out_shape=jax.ShapeDtypeStruct((B, n_stats, C), x.dtype),
        grid_spec=pltpu.PrefetchScalarGridSpec(
            num_scalar_prefetch=0,
            grid=(n_b, n_t),                               # reduction (time) axis last
            in_specs=[pl.BlockSpec((TB, C, TT), lambda b, t: (b, 0, t))],
            out_specs=pl.BlockSpec((TB, n_stats, C), lambda b, t: (b, 0, 0)),
            scratch_shapes=scratch_shapes,
        ),
        compiler_params=pltpu.CompilerParams(
            dimension_semantics=("parallel", "arbitrary"),
            vmem_limit_bytes=vmem_limit,
        ),
    )(x)

    # (B, n_stats, C) -> (B, n_stats*C): identical layout to torch.cat(dim=1).
    return out3.reshape(B, n_stats * C)


def _reference(x, stats_type='standard', is_second_order_stat_only=False):
    x = x.astype(jnp.float32)
    mean = jnp.mean(x, axis=-1)
    var = jnp.mean(jnp.square(x - mean[..., None]), axis=-1)   # unbiased=False
    if stats_type == 'standard':
        second = jnp.sqrt(var)
    else:
        second = jnp.sqrt(jnp.square(mean) + var)
    return second if is_second_order_stat_only else jnp.concatenate([mean, second], axis=1)


if __name__ == "__main__":
    ok = True
    k0, k1 = jax.random.split(jax.random.PRNGKey(0))

    # Small (B, C, T) matching the module layout; single time tile path.
    x_small = jax.random.normal(k0, (2, 4, 16), dtype=jnp.float32)
    # Nonzero mean + longer T.  The third case forces batch/time tiling to
    # exercise the partial batch block and the masked multi-tile reduction.
    x_big = 3.0 + 2.0 * jax.random.normal(k1, (3, 6, 700), dtype=jnp.float32)

    cases = [
        (x_small, {}),
        (x_big, {}),
        (x_big, dict(max_batch_tile=2, max_time_tile=256)),
    ]
    for x, tiling in cases:
        for stats_type in ("standard", "rms"):
            for second_only in (False, True):
                out = jax.block_until_ready(
                    stats_pooling(x, stats_type, second_only, **tiling))
                ref = _reference(x, stats_type, second_only)
                if out.shape != ref.shape or not jnp.allclose(
                        out, ref, atol=1e-4, rtol=1e-4):
                    ok = False

    print("KERNEL_OK" if ok else "KERNEL_MISMATCH")
</pallas_src>

<mosaic_0001>
module attributes {stable_mosaic.version = 11 : i64} {
  func.func @_stats_pool_kernel(%arg0: i32, %arg1: i32, %arg2: memref<2x4x16xf32, #tpu.memory_space<vmem>>, %arg3: memref<2x2x4xf32, #tpu.memory_space<vmem>>) attributes {dimension_semantics = [#tpu.dimension_semantics<parallel>, #tpu.dimension_semantics<arbitrary>], iteration_bounds = array<i64: 1, 1>, scalar_prefetch = 0 : i64, scratch_operands = 0 : i64, tpu.core_type = #tpu.core_type<tc>, window_params = [{transform_indices = @transform_0, window_bounds = array<i64: 2, 4, 16>}, {transform_indices = @transform_1, window_bounds = array<i64: 2, 2, 4>}]} {
    %c0 = arith.constant 0 : index
    %c0_0 = arith.constant 0 : index
    %c0_1 = arith.constant 0 : index
    %0 = vector.load %arg2[%c0, %c0_0, %c0_1] : memref<2x4x16xf32, #tpu.memory_space<vmem>>, vector<2x4x16xf32>
    %cst = arith.constant dense<0.000000e+00> : vector<2x4xf32>
    %1 = vector.multi_reduction <add>, %0, %cst [2] : vector<2x4x16xf32> to vector<2x4xf32>
    %cst_2 = arith.constant 6.250000e-02 : f32
    %2 = vector.broadcast %cst_2 : f32 to vector<2x4xf32>
    %3 = arith.mulf %1, %2 : vector<2x4xf32>
    %4 = vector.shape_cast %3 : vector<2x4xf32> to vector<2x4x1xf32>
    %5 = vector.broadcast %4 : vector<2x4x1xf32> to vector<2x4x16xf32>
    %6 = arith.subf %0, %5 : vector<2x4x16xf32>
    %7 = arith.mulf %6, %6 : vector<2x4x16xf32>
    %cst_3 = arith.constant dense<0.000000e+00> : vector<2x4xf32>
    %8 = vector.multi_reduction <add>, %7, %cst_3 [2] : vector<2x4x16xf32> to vector<2x4xf32>
    %cst_4 = arith.constant 6.250000e-02 : f32
    %9 = vector.broadcast %cst_4 : f32 to vector<2x4xf32>
    %10 = arith.mulf %8, %9 : vector<2x4xf32>
    %cst_5 = arith.constant 0.000000e+00 : f32
    %11 = vector.broadcast %cst_5 : f32 to vector<2x4xf32>
    %12 = arith.maximumf %10, %11 : vector<2x4xf32>
    %13 = math.sqrt %12 : vector<2x4xf32>
    %c0_6 = arith.constant 0 : index
    %c0_7 = arith.constant 0 : index
    %c0_8 = arith.constant 0 : index
    %14 = vector.load %arg3[%c0_6, %c0_7, %c0_8] : memref<2x2x4xf32, #tpu.memory_space<vmem>>, vector<2x1x4xf32>
    %15 = vector.shape_cast %14 : vector<2x1x4xf32> to vector<2x4xf32>
    %16 = vector.shape_cast %3 : vector<2x4xf32> to vector<2x1x4xf32>
    tpu.vector_store %arg3[%c0_6, %c0_7, %c0_8], %16 {strides = array<i32>} : memref<2x2x4xf32, #tpu.memory_space<vmem>>, vector<2x1x4xf32>,
    %c0_9 = arith.constant 0 : index
    %c1 = arith.constant 1 : index
    %c0_10 = arith.constant 0 : index
    %17 = vector.load %arg3[%c0_9, %c1, %c0_10] : memref<2x2x4xf32, #tpu.memory_space<vmem>>, vector<2x1x4xf32>
    %18 = vector.shape_cast %17 : vector<2x1x4xf32> to vector<2x4xf32>
    %19 = vector.shape_cast %13 : vector<2x4xf32> to vector<2x1x4xf32>
    tpu.vector_store %arg3[%c0_9, %c1, %c0_10], %19 {strides = array<i32>} : memref<2x2x4xf32, #tpu.memory_space<vmem>>, vector<2x1x4xf32>,
    return
  }
  func.func @transform_0(%arg0: i32, %arg1: i32) -> (i32, i32, i32) {
    %c0_i32 = arith.constant 0 : i32
    %c0_i32_0 = arith.constant 0 : i32
    return %arg0, %c0_i32, %arg1 : i32, i32, i32
  }
  func.func @transform_1(%arg0: i32, %arg1: i32) -> (i32, i32, i32) {
    %c0_i32 = arith.constant 0 : i32
    %c0_i32_0 = arith.constant 0 : i32
    %c0_i32_1 = arith.constant 0 : i32
    return %arg0, %c0_i32, %c0_i32_0 : i32, i32, i32
  }
}

</mosaic_0001>

<llo_original>
// kernel: tpu_custom_call.1
$region0: #{tpu_custom_call.1}
  #allocation0 [shape = 'u32[]', space=smem, size = 0x4, offset = 0x4, fixed_abs, tag = 'smem constant byte address 0x4 - core index']
  #allocation1 [shape = 'u32[144,128]{1,0:T(1,128)}', space=vmem, size = 0x12000, scoped, tag = 'internal scratch']
  %s0 = inlined_call_operand.hbm [shape: f32[2,4,16], index: 0, kind: input, shape index: {}]
  %s1 = inlined_call_operand.hbm [shape: f32[2,2,4], index: 1, kind: output, shape index: {}]
  %s2 = sld [smem:[#allocation0]]
  $region18: #{tpu_custom_call.1} parent=0
    _
  %s4 = ssub.s32 1, %s2
  %s5 = scalar_select 0, %s4, %s2
  $region1: #{tpu_custom_call.1} parent=0
    #allocation2 [shape = 'u8[4096]{0}', space=vmem, size = 0x1000, scoped, tag = 'input window, operand 0, single buffered']
    #allocation3 [shape = 's32[1]{0}', space=sflag, size = 0x4, scoped, tag = 'scoped memory for tpu_custom_call.1']
    #allocation4 [shape = 's32[1]{0}', space=sflag, size = 0x4, scoped, tag = 'scoped memory for tpu_custom_call.1']
    #allocation5 [shape = 'u8[2048]{0}', space=vmem, size = 0x800, scoped, tag = 'output window, operand 0, single buffered']
    %6 = vsyncpa [#allocation3], 0
    %7 = vsyncpa [#allocation4], 0
    // Predicated region
    $region2: #{tpu_custom_call.1} parent=1 // pred_check
      _
    $region3: #{tpu_custom_call.1} parent=1 // pred_check_branch
      %9 = sbr.rel (0) target = $region5
    $region4: #{tpu_custom_call.1} parent=1 // pred_region
      %s11 = ssub.s32 128, 128
      %12 = vsyncadd [#allocation3], %s11
      %s13 = sshll.u32 [#allocation2], 4
      %s14 = int_to_ptr.vmem [resolvable:$true] %s13
      %19 = dma.hbm_to_vmem [thread:$0]  %s0, 128, %s14, [#allocation3], 64, 64, 4
    $region5: #{tpu_custom_call.1} parent=1 // pred_fallthru
      _
    // Predicated region
    $region6: #{tpu_custom_call.1} parent=1 // pred_check
      _
    $region7: #{tpu_custom_call.1} parent=1 // pred_check_branch
      %21 = sbr.rel (0) target = $region9
    $region8: #{tpu_custom_call.1} parent=1 // pred_region
      %22 = dma.done [#allocation3], 128
    $region9: #{tpu_custom_call.1} parent=1 // pred_fallthru
      _
    %v23 = vld [vmem:[#allocation2] sm:$0xf]
    %v24 = vld [vmem:[#allocation2 + $0x4] sm:$0xf]
    %vm25 = vcmask 125952
    %v26 = vsel %vm25, %v23, 0.0
    %27 = vadd.xlane.f32.xlu0 %v26
    %v28 = vpop.xlane.xlu0 %27
    %v29 = vsel %vm25, %v24, 0.0
    %30 = vadd.xlane.f32.xlu0 %v29
    %v31 = vpop.xlane.xlu0 %30
    %v32 = vmul.f32 %v28, 0.0625
    %v33 = vmul.f32 %v31, 0.0625
    %v34 = vsub.f32 %v23, %v32
    %v35 = vsub.f32 %v24, %v33
    %v36 = vmul.f32 %v34, %v34
    %v37 = vmul.f32 %v35, %v35
    %v38 = vsel %vm25, %v36, 0.0
    %39 = vadd.xlane.f32.xlu0 %v38
    %v40 = vpop.xlane.xlu0 %39
    %v41 = vsel %vm25, %v37, 0.0
    %42 = vadd.xlane.f32.xlu0 %v41
    %v43 = vpop.xlane.xlu0 %42
    %v44 = vmul.f32 %v40, 0.0625
    %v45 = vmul.f32 %v43, 0.0625
    %v46 = vmax.f32 %v44, 0.0
    %v47 = vmax.f32 %v45, 0.0
    %v48 = vrsqrt.pop %v46
    %v49 = vmul.f32 %v46, %v48
    %vm50 = vcmp.eq.f32.partialorder %v46, inf
    %v51 = vsel %vm50, %v46, %v49
    %vm52 = vcmp.eq.f32.partialorder %v46, 0.0
    %v53 = vand.u32 %v46, 2147483648
    %v54 = vsel %vm52, %v53, %v51
    %v55 = vrsqrt.pop %v47
    %v56 = vmul.f32 %v47, %v55
    %vm57 = vcmp.eq.f32.partialorder %v47, inf
    %v58 = vsel %vm57, %v47, %v56
    %vm59 = vcmp.eq.f32.partialorder %v47, 0.0
    %v60 = vand.u32 %v47, 2147483648
    %v61 = vsel %vm59, %v60, %v58
    %v64 = vlaneseq
    %v65 = vand.u32 %v64, 127
    %v66 = vlaneseq
    %v67 = vshrl.u32 %v66, 7
    %v68 = vsub.s32 %v65, %v67
    %v69 = vrot.slane %v32, %v68
    %v70 = vlaneseq
    %v71 = vshrl.u32 %v70, 7
    %v72 = vsub.s32 %v65, %v71
    %v73 = vrot.slane %v33, %v72
    %vm76 = vcmask 24576
    %77 = vst.msk [vmem:[#allocation5] sm:$0x1] %vm76, %v69
    %78 = vst.msk [vmem:[#allocation5 + $0x2] sm:$0x1] %vm76, %v73
    %v81 = vlaneseq
    %v82 = vshrl.u32 %v81, 7
    %v83 = vsub.s32 %v65, %v82
    %v84 = vrot.slane %v54, %v83
    %v85 = vlaneseq
    %v86 = vshrl.u32 %v85, 7
    %v87 = vsub.s32 %v65, %v86
    %v88 = vrot.slane %v61, %v87
    %91 = vst.msk [vmem:[#allocation5 + $0x1] sm:$0x1] %vm76, %v84
    %92 = vst.msk [vmem:[#allocation5 + $0x3] sm:$0x1] %vm76, %v88
    // Predicated region
    $region10: #{tpu_custom_call.1} parent=1 // pred_check
      _
    $region11: #{tpu_custom_call.1} parent=1 // pred_check_branch
      %94 = sbr.rel (0) target = $region13
    $region12: #{tpu_custom_call.1} parent=1 // pred_region
      %s96 = ssub.s32 64, 64
      %97 = vsyncadd [#allocation4], %s96
      %s98 = sshll.u32 [#allocation5], 4
      %s99 = int_to_ptr.vmem [resolvable:$true] %s98
      %104 = dma.vmem_to_hbm [thread:$0]  %s99, 64, %s1, [#allocation4], 32, 32, 2
    $region13: #{tpu_custom_call.1} parent=1 // pred_fallthru
      _
    // Predicated region
    $region14: #{tpu_custom_call.1} parent=1 // pred_check
      _
    $region15: #{tpu_custom_call.1} parent=1 // pred_check_branch
      %106 = sbr.rel (0) target = $region17
    $region16: #{tpu_custom_call.1} parent=1 // pred_region
      %107 = dma.done [#allocation4], 64
    $region17: #{tpu_custom_call.1} parent=1 // pred_fallthru
      _
    %108 = vsyncpa [#allocation3], 1
    %109 = vsyncpa [#allocation4], 1

</llo_original>
